<compile_context>
chip_gen: v6e
topology: v6e:2x2x1
jax: 0.10.0
libtpu: 0.0.40
codegen_flags: <defaults>
</compile_context>

<pallas_src>
import functools

import jax
import jax.numpy as jnp
from jax.experimental import pallas as pl
from jax.experimental.pallas import tpu as pltpu


def _round_up(x, m):
    return (x + m - 1) // m * m


def _vmem_capacity_bytes():
    """Generation-aware VMEM capacity (bytes); falls back to the smallest
    current generation (v7x: 64 MiB per TensorCore)."""
    try:
        cap = getattr(pltpu.get_tpu_info(), "vmem_capacity_bytes", None)
        if cap:
            return int(cap)
    except Exception:
        pass
    return 64 * 1024 * 1024


def prepare_linear_weight(weight, compute_dtype=jnp.bfloat16):
    """One-time parameter prep (call once, outside the per-step forward).

    Takes the PyTorch nn.Linear weight (dim_out, dim_in) and returns it in
    MXU-native (K, N) = (dim_in, no_pad) layout, cast to `compute_dtype`, with
    output lanes zero-padded to a multiple of 128. Padded columns produce
    relu(0) = 0 and are sliced off in the forward, so the padding is exact.
    """
    dim_out, dim_in = weight.shape
    no_pad = _round_up(dim_out, 128)
    w = jnp.asarray(weight).T.astype(compute_dtype)       # (dim_in, dim_out)
    if no_pad != dim_out:
        w = jnp.pad(w, ((0, 0), (0, no_pad - dim_out)))
    return w


def _linear_relu_kernel(x_ref, w_ref, o_ref, acc_ref):
    """One (tm, tn) output tile of relu(x @ W.T), accumulated over the K axis.

    x_ref:   (tm, tk)  input rows in their HBM dtype (cast per-tile below)
    w_ref:   (tk, tn)  prepared weight, (K, N) layout, compute dtype
    o_ref:   (tm, tn)  output tile
    acc_ref: (tm, tn)  f32 accumulator scratch (persists across K grid steps)
    """
    k = pl.program_id(2)

    @pl.when(k == 0)
    def _():
        acc_ref[...] = jnp.zeros_like(acc_ref)

    w = w_ref[...]
    acc_ref[...] += jnp.dot(
        x_ref[...].astype(w.dtype), w, preferred_element_type=jnp.float32)

    @pl.when(k == pl.num_programs(2) - 1)
    def _():
        # ReLU epilogue on the f32 accumulator; eval-mode dropout is identity.
        o_ref[...] = jnp.maximum(acc_ref[...], 0.0).astype(o_ref.dtype)


def general_layer_linear(x, w_prepped, *, dim_out, dropout_p=0.0,
                         training=False, tm=512, use_core_parallel=False):
    """GeneralLayer('linear', dim_in, dim_out, dropout) forward (eval mode).

    x:          (N, dim_in)        node features (f32 or bf16)
    w_prepped:  (dim_in, no_pad)   from prepare_linear_weight()
    dim_out:    logical output width (<= no_pad)
    returns     (N, dim_out) in x.dtype
    """
    if training and dropout_p > 0.0:
        # TODO(synk): training-mode nn.Dropout (pltpu.prng_seed /
        # prng_random_bits mask scaled by 1/(1-p)) is not implemented.
        raise NotImplementedError("training-mode dropout not implemented")
    assert x.ndim == 2
    n, dim_in = x.shape
    k_w, no_pad = w_prepped.shape
    assert k_w == dim_in and no_pad % 128 == 0 and dim_out <= no_pad

    out_dtype = x.dtype
    bpe_x = jnp.dtype(x.dtype).itemsize
    bpe_c = jnp.dtype(w_prepped.dtype).itemsize
    bpe_o = jnp.dtype(out_dtype).itemsize

    # ---- generation-aware VMEM budget -------------------------------------
    vmem_budget = int(0.75 * _vmem_capacity_bytes())     # ~48 MiB on v7x

    def block_vmem(tm_, tk_, tn_):
        # Double-buffered pipelined operands + single f32 accumulator scratch.
        return (2 * tm_ * tk_ * bpe_x        # x tile (HBM dtype)
                + 2 * tk_ * tn_ * bpe_c      # weight tile (compute dtype)
                + 2 * tm_ * tn_ * bpe_o      # output tile
                + tm_ * tn_ * 4)             # f32 accumulator

    # ---- tile selection ----------------------------------------------------
    sub = 8  # sublane multiple for M (second-to-last) dims; x/out stay f32
    # N tile: multiple of 256 where possible (v6e/v7x 2x256^2 MXU), 128 min.
    tn = next(c for c in (512, 256, 128) if no_pad % c == 0)
    # M tile: as requested, clamped to the row count. Ragged last M block is
    # exact: OOB rows only affect OOB output rows, which Pallas discards.
    tm_eff = max(sub, _round_up(min(tm, n), sub))
    # K tile: keep the whole contraction resident when it fits (exact, no x
    # padding needed). Otherwise split only along exact divisors of dim_in so
    # a ragged K block (garbage columns entering the dot) can never occur.
    tk = dim_in
    if block_vmem(tm_eff, tk, tn) > vmem_budget:
        for cand in (4096, 2048, 1024, 512, 256, 128):
            if dim_in % cand == 0 and block_vmem(tm_eff, cand, tn) <= vmem_budget:
                tk = cand
                break
    # Last resort: shrink the M tile until the working set fits.
    while block_vmem(tm_eff, tk, tn) > vmem_budget and tm_eff > sub:
        tm_eff = max(sub, _round_up(tm_eff // 2, sub))

    grid_m = pl.cdiv(n, tm_eff)
    grid_n = no_pad // tn
    grid_k = pl.cdiv(dim_in, tk)          # exact by construction when tk < dim_in
    grid = (grid_m, grid_n, grid_k)

    vmem_needed = block_vmem(tm_eff, tk, tn)
    # No double-hedging: needed already counts double buffers; add small headroom.
    vmem_limit = int(max(min(vmem_budget, vmem_needed + (4 << 20)), vmem_needed))

    cost = pl.CostEstimate(
        flops=2 * n * dim_in * no_pad,
        transcendentals=0,
        bytes_accessed=(grid_n * n * dim_in * bpe_x
                        + grid_m * dim_in * no_pad * bpe_c
                        + n * no_pad * bpe_o))

    # v7x: set use_core_parallel=True to shard the M axis across the 2 TCs.
    m_sem = pltpu.CORE_PARALLEL if use_core_parallel else "parallel"

    out_padded = pl.pallas_call(
        _linear_relu_kernel,
        out_shape=jax.ShapeDtypeStruct((n, no_pad), out_dtype),
        grid_spec=pltpu.PrefetchScalarGridSpec(
            num_scalar_prefetch=0,
            grid=grid,
            in_specs=[
                pl.BlockSpec((tm_eff, tk), lambda i, j, k: (i, k)),
                pl.BlockSpec((tk, tn), lambda i, j, k: (k, j)),
            ],
            out_specs=pl.BlockSpec((tm_eff, tn), lambda i, j, k: (i, j)),
            scratch_shapes=[pltpu.VMEM((tm_eff, tn), jnp.float32)],
        ),
        compiler_params=pltpu.CompilerParams(
            dimension_semantics=(m_sem, "parallel", "arbitrary"),
            vmem_limit_bytes=vmem_limit,
        ),
        cost_estimate=cost,
    )(x, w_prepped)

    if no_pad != dim_out:
        out_padded = out_padded[:, :dim_out]
    return out_padded


def init_linear_weight(key, dim_in, dim_out):
    """Deterministic stand-in for nn.Linear's kaiming-uniform init."""
    bound = 1.0 / jnp.sqrt(jnp.float32(dim_in))
    return jax.random.uniform(
        key, (dim_out, dim_in), dtype=jnp.float32, minval=-bound, maxval=bound)


if __name__ == "__main__":
    # Small shapes consistent with GeneralLayer('linear', dim_in=32, dim_out=32).
    N, DIM_IN, DIM_OUT = 64, 32, 32

    key = jax.random.PRNGKey(0)
    kx, kw = jax.random.split(key)
    x = jax.random.normal(kx, (N, DIM_IN), dtype=jnp.float32)
    w = init_linear_weight(kw, DIM_IN, DIM_OUT)

    ref = jnp.maximum(x @ w.T, 0.0)     # eval-mode dropout is identity

    # Default path: bf16 MXU operands on all generations, f32 accumulate.
    w_bf16 = prepare_linear_weight(w, compute_dtype=jnp.bfloat16)
    fwd_bf16 = jax.jit(functools.partial(general_layer_linear, dim_out=DIM_OUT))
    out_bf16 = jax.block_until_ready(fwd_bf16(x, w_bf16))
    assert out_bf16.shape == (N, DIM_OUT)
    assert jnp.allclose(out_bf16, ref, atol=5e-2, rtol=5e-2)

    # f32 operand path (tight numerics check of the kernel structure).
    w_f32 = prepare_linear_weight(w, compute_dtype=jnp.float32)
    fwd_f32 = jax.jit(functools.partial(general_layer_linear, dim_out=DIM_OUT))
    out_f32 = jax.block_until_ready(fwd_f32(x, w_f32))
    assert out_f32.shape == (N, DIM_OUT)
    assert jnp.allclose(out_f32, ref, atol=1e-5, rtol=1e-5)

    print("KERNEL_OK")
</pallas_src>

<mosaic_0001>
module attributes {stable_mosaic.version = 11 : i64} {
  func.func @_linear_relu_kernel(%arg0: i32, %arg1: i32, %arg2: i32, %arg3: memref<64x32xf32, #tpu.memory_space<vmem>>, %arg4: memref<32x128xbf16, #tpu.memory_space<vmem>>, %arg5: memref<64x128xf32, #tpu.memory_space<vmem>>, %arg6: memref<64x128xf32, #tpu.memory_space<vmem>>) attributes {dimension_semantics = [#tpu.dimension_semantics<parallel>, #tpu.dimension_semantics<parallel>, #tpu.dimension_semantics<arbitrary>], iteration_bounds = array<i64: 1, 1, 1>, scalar_prefetch = 0 : i64, scratch_operands = 1 : i64, tpu.core_type = #tpu.core_type<tc>, window_params = [{transform_indices = @transform_0, window_bounds = array<i64: 64, 32>}, {transform_indices = @transform_1, window_bounds = array<i64: 32, 128>}, {transform_indices = @transform_2, window_bounds = array<i64: 64, 128>}]} {
    %c0_i32 = arith.constant 0 : i32
    %0 = arith.cmpi eq, %arg2, %c0_i32 : i32
    %1 = arith.extui %0 : i1 to i32
    %c0_i32_0 = arith.constant 0 : i32
    %2 = arith.cmpi ne, %1, %c0_i32_0 : i32
    scf.if %2 {
      %cst_10 = arith.constant 0.000000e+00 : f32
      %13 = vector.broadcast %cst_10 : f32 to vector<64x128xf32>
      %c0_11 = arith.constant 0 : index
      %c0_12 = arith.constant 0 : index
      %14 = vector.load %arg6[%c0_11, %c0_12] : memref<64x128xf32, #tpu.memory_space<vmem>>, vector<64x128xf32>
      tpu.vector_store %arg6[%c0_11, %c0_12], %13 {strides = array<i32>} : memref<64x128xf32, #tpu.memory_space<vmem>>, vector<64x128xf32>,
    } else {
    }
    %c0 = arith.constant 0 : index
    %c0_1 = arith.constant 0 : index
    %3 = vector.load %arg4[%c0, %c0_1] : memref<32x128xbf16, #tpu.memory_space<vmem>>, vector<32x128xbf16>
    %c0_2 = arith.constant 0 : index
    %c0_3 = arith.constant 0 : index
    %4 = vector.load %arg6[%c0_2, %c0_3] : memref<64x128xf32, #tpu.memory_space<vmem>>, vector<64x128xf32>
    %c0_4 = arith.constant 0 : index
    %c0_5 = arith.constant 0 : index
    %5 = vector.load %arg3[%c0_4, %c0_5] : memref<64x32xf32, #tpu.memory_space<vmem>>, vector<64x32xf32>
    %6 = arith.truncf %5 : vector<64x32xf32> to vector<64x32xbf16>
    %cst = arith.constant dense<0.000000e+00> : vector<64x128xf32>
    %7 = tpu.matmul %6, %3, %cst {dimension_numbers = #tpu.dot_dimension_numbers<[1], [0], [0], [1], [0, 0, 1, 1], [], []>} : vector<64x32xbf16>, vector<32x128xbf16>, vector<64x128xf32> -> vector<64x128xf32>
    %8 = arith.addf %4, %7 : vector<64x128xf32>
    %c0_6 = arith.constant 0 : index
    %c0_7 = arith.constant 0 : index
    %9 = vector.load %arg6[%c0_6, %c0_7] : memref<64x128xf32, #tpu.memory_space<vmem>>, vector<64x128xf32>
    tpu.vector_store %arg6[%c0_6, %c0_7], %8 {strides = array<i32>} : memref<64x128xf32, #tpu.memory_space<vmem>>, vector<64x128xf32>,
    %c0_i32_8 = arith.constant 0 : i32
    %10 = arith.cmpi eq, %arg2, %c0_i32_8 : i32
    %11 = arith.extui %10 : i1 to i32
    %c0_i32_9 = arith.constant 0 : i32
    %12 = arith.cmpi ne, %11, %c0_i32_9 : i32
    scf.if %12 {
      %c0_10 = arith.constant 0 : index
      %c0_11 = arith.constant 0 : index
      %13 = vector.load %arg6[%c0_10, %c0_11] : memref<64x128xf32, #tpu.memory_space<vmem>>, vector<64x128xf32>
      %cst_12 = arith.constant 0.000000e+00 : f32
      %14 = vector.broadcast %cst_12 : f32 to vector<64x128xf32>
      %15 = arith.maximumf %13, %14 : vector<64x128xf32>
      %c0_13 = arith.constant 0 : index
      %c0_14 = arith.constant 0 : index
      %16 = vector.load %arg5[%c0_13, %c0_14] : memref<64x128xf32, #tpu.memory_space<vmem>>, vector<64x128xf32>
      tpu.vector_store %arg5[%c0_13, %c0_14], %15 {strides = array<i32>} : memref<64x128xf32, #tpu.memory_space<vmem>>, vector<64x128xf32>,
    } else {
    }
    return
  }
  func.func @transform_0(%arg0: i32, %arg1: i32, %arg2: i32) -> (i32, i32) {
    %c0_i32 = arith.constant 0 : i32
    return %arg0, %arg2 : i32, i32
  }
  func.func @transform_1(%arg0: i32, %arg1: i32, %arg2: i32) -> (i32, i32) {
    %c0_i32 = arith.constant 0 : i32
    return %arg2, %arg1 : i32, i32
  }
  func.func @transform_2(%arg0: i32, %arg1: i32, %arg2: i32) -> (i32, i32) {
    %c0_i32 = arith.constant 0 : i32
    return %arg0, %arg1 : i32, i32
  }
}

</mosaic_0001>

<llo_original>
// kernel: general_layer_linear.1
$region0: #{general_layer_linear.1}
  #allocation0 [shape = 'u32[]', space=smem, size = 0x4, offset = 0x4, fixed_abs, tag = 'smem constant byte address 0x4 - core index']
  #allocation1 [shape = 'u32[144,128]{1,0:T(1,128)}', space=vmem, size = 0x12000, scoped, tag = 'internal scratch']
  #allocation2 [shape = 'f32[64,128]{1,0:T(8,128)}', space=vmem, size = 0x8000, scoped, tag = 'scratch operand']
  %s0 = inlined_call_operand.vmem [shape: f32[64,32], index: 0, kind: input, shape index: {}]
  %s1 = inlined_call_operand.vmem [shape: bf16[32,128], index: 1, kind: input, shape index: {}]
  %s2 = inlined_call_operand.vmem [shape: f32[64,128], index: 2, kind: output, shape index: {}]
  %s3 = sld [smem:[#allocation0]]
  $region26: #{general_layer_linear.1} parent=0
    _
  %s5 = ssub.s32 1, %s3
  %s6 = scalar_select 0, %s5, %s3
  // Predicated region
  $region2: #{general_layer_linear.1} parent=0 // pred_check
    _
  $region3: #{general_layer_linear.1} parent=0 // pred_check_branch
    %8 = sbr.rel (0) target = $region5
  $region4: #{general_layer_linear.1} parent=0 // pred_region
    _
  $region5: #{general_layer_linear.1} parent=0 // pred_fallthru
    _
  // Predicated region
  $region6: #{general_layer_linear.1} parent=0 // pred_check
    _
  $region7: #{general_layer_linear.1} parent=0 // pred_check_branch
    %10 = sbr.rel (0) target = $region9
  $region8: #{general_layer_linear.1} parent=0 // pred_region
    _
  $region9: #{general_layer_linear.1} parent=0 // pred_fallthru
    _
  %p12 = scmp.eq.s32.totalorder 0, 0
  // Predicated region
  $region10: #{general_layer_linear.1} parent=0 // pred_check
    %p13 = pneg %p12
  $region11: #{general_layer_linear.1} parent=0 // pred_check_branch
    %15 = sbr.rel (%p13) target = $region13
  $region12: #{general_layer_linear.1} parent=0 // pred_region
    %16 = vst [vmem:[#allocation2] sm:$0xff] 0.0
    %17 = vst [vmem:[#allocation2 + $0x8] sm:$0xff] 0.0
    %18 = vst [vmem:[#allocation2 + $0x10] sm:$0xff] 0.0
    %19 = vst [vmem:[#allocation2 + $0x18] sm:$0xff] 0.0
    %20 = vst [vmem:[#allocation2 + $0x20] sm:$0xff] 0.0
    %21 = vst [vmem:[#allocation2 + $0x28] sm:$0xff] 0.0
    %22 = vst [vmem:[#allocation2 + $0x30] sm:$0xff] 0.0
    %23 = vst [vmem:[#allocation2 + $0x38] sm:$0xff] 0.0
  $region13: #{general_layer_linear.1} parent=0 // pred_fallthru
    _
  %v24 = vld [vmem:[%s1] sm:$0xf]
  %v25 = vld [vmem:[%s1 + $0x4] sm:$0xf]
  %v26 = vld [vmem:[%s1 + $0x8] sm:$0xf]
  %v27 = vld [vmem:[%s1 + $0xc] sm:$0xf]
  %v28 = vld [vmem:[#allocation2] sm:$0xff]
  %v29 = vld [vmem:[#allocation2 + $0x8] sm:$0xff]
  %v30 = vld [vmem:[#allocation2 + $0x10] sm:$0xff]
  %v31 = vld [vmem:[#allocation2 + $0x18] sm:$0xff]
  %v32 = vld [vmem:[#allocation2 + $0x20] sm:$0xff]
  %v33 = vld [vmem:[#allocation2 + $0x28] sm:$0xff]
  %v34 = vld [vmem:[#allocation2 + $0x30] sm:$0xff]
  %v35 = vld [vmem:[#allocation2 + $0x38] sm:$0xff]
  %v36 = vld [vmem:[%s0] sm:$0xff]
  %v37 = vld [vmem:[%s0 + $0x8] sm:$0xff]
  %v38 = vld [vmem:[%s0 + $0x10] sm:$0xff]
  %v39 = vld [vmem:[%s0 + $0x18] sm:$0xff]
  %v40 = vld [vmem:[%s0 + $0x20] sm:$0xff]
  %v41 = vld [vmem:[%s0 + $0x28] sm:$0xff]
  %v42 = vld [vmem:[%s0 + $0x30] sm:$0xff]
  %v43 = vld [vmem:[%s0 + $0x38] sm:$0xff]
  %v44 = vpack.c.bf16 %v37, %v36
  %v45 = vpack.c.bf16 %v39, %v38
  %v46 = vpack.c.bf16 %v41, %v40
  %v47 = vpack.c.bf16 %v43, %v42
  %v52 = vunpack.c.l.b16 %v24
  %v53 = vunpack.c.l.b16 %v25
  %v54 = vunpack.c.l.b16 %v26
  %v55 = vunpack.c.l.b16 %v27
  %v56 = vpack.c.b16 %v53, %v52
  %v57 = vpack.c.b16 %v55, %v54
  %vm60 = vcmask 261120
  %v62 = vsel %vm60, %v44, 0
  %v65 = vsel %vm60, %v45, 0
  %v68 = vsel %vm60, %v46, 0
  %v71 = vsel %vm60, %v47, 0
  %73 = vmatprep.subr.bf16.mxu0 0
  %74 = vmatpush1.bf16.msra.mxu0 0
  %75 = vmatprep.subr.bf16.mxu0 0
  %76 = vmatpush1.bf16.msra.mxu0 0
  %77 = vmatprep.subr.bf16.mxu0 0
  %78 = vmatpush1.bf16.msra.mxu0 0
  %79 = vmatprep.subr.bf16.mxu0 0
  %80 = vmatpush1.bf16.msra.mxu0 0
  %81 = vmatprep.subr.bf16.mxu0 0
  %82 = vmatpush1.bf16.msra.mxu0 0
  %83 = vmatprep.subr.bf16.mxu0 0
  %84 = vmatpush1.bf16.msra.mxu0 0
  %85 = vmatprep.subr.bf16.mxu0 0
  %86 = vmatpush1.bf16.msra.mxu0 %v57
  %87 = vmatprep.subr.bf16.mxu0 0
  %88 = vmatpush1.bf16.msra.mxu0 %v56
  %89 = vmatprep.subr.bf16.mxu0 0
  %90 = vmatpush2.bf16.msra.mxu0 0
  %91 = vmatprep.subr.bf16.mxu0 0
  %92 = vmatpush2.bf16.msra.mxu0 0
  %93 = vmatprep.subr.bf16.mxu0 0
  %94 = vmatpush2.bf16.msra.mxu0 0
  %95 = vmatprep.subr.bf16.mxu0 0
  %96 = vmatpush2.bf16.msra.mxu0 0
  %97 = vmatprep.subr.bf16.mxu0 0
  %98 = vmatpush2.bf16.msra.mxu0 0
  %99 = vmatprep.subr.bf16.mxu0 0
  %100 = vmatpush2.bf16.msra.mxu0 0
  %101 = vmatprep.subr.bf16.mxu0 0
  %102 = vmatpush2.bf16.msra.mxu0 0
  %103 = vmatprep.subr.bf16.mxu0 0
  %104 = vmatpush2.bf16.msra.mxu0 0
  %105 = vmatprep.mubr.bf16.mxu0 0
  %106 = vmatmul.mubr.bf16.gmra.mxu0 %v62
  %v107 = vpop.f32.mrf.mxu0
  %v108 = vadd.f32 0.0, %v107
  %v109 = vpop.f32.mrf.mxu0
  %v110 = vpop.f32.mrf.mxu0
  %v111 = vadd.f32 0.0, %v110
  %v112 = vpop.f32.mrf.mxu0
  %113 = vmatprep.mubr.bf16.mxu0 0
  %114 = vmatmul.mubr.bf16.gmra.mxu0 %v65
  %v115 = vpop.f32.mrf.mxu0
  %v116 = vadd.f32 0.0, %v115
  %v117 = vpop.f32.mrf.mxu0
  %v118 = vpop.f32.mrf.mxu0
  %v119 = vadd.f32 0.0, %v118
  %v120 = vpop.f32.mrf.mxu0
  %121 = vmatprep.mubr.bf16.mxu0 0
  %122 = vmatmul.mubr.bf16.gmra.mxu0 %v68
  %v123 = vpop.f32.mrf.mxu0
  %v124 = vadd.f32 0.0, %v123
  %v125 = vpop.f32.mrf.mxu0
  %v126 = vpop.f32.mrf.mxu0
  %v127 = vadd.f32 0.0, %v126
  %v128 = vpop.f32.mrf.mxu0
  %129 = vmatprep.mubr.bf16.mxu0 0
  %130 = vmatmul.mubr.bf16.gmra.mxu0 %v71
  %v131 = vpop.f32.mrf.mxu0
  %v132 = vadd.f32 0.0, %v131
  %v133 = vpop.f32.mrf.mxu0
  %v134 = vpop.f32.mrf.mxu0
  %v135 = vadd.f32 0.0, %v134
  %v136 = vpop.f32.mrf.mxu0
  %137 = vdwg.mxu0
  %v138 = vadd.f32 %v28, %v108
  %v139 = vadd.f32 %v29, %v111
  %v140 = vadd.f32 %v30, %v116
  %v141 = vadd.f32 %v31, %v119
  %v142 = vadd.f32 %v32, %v124
  %v143 = vadd.f32 %v33, %v127
  %v144 = vadd.f32 %v34, %v132
  %v145 = vadd.f32 %v35, %v135
  %146 = vst [vmem:[#allocation2] sm:$0xff] %v138
  %147 = vst [vmem:[#allocation2 + $0x8] sm:$0xff] %v139
  %148 = vst [vmem:[#allocation2 + $0x10] sm:$0xff] %v140
  %149 = vst [vmem:[#allocation2 + $0x18] sm:$0xff] %v141
  %150 = vst [vmem:[#allocation2 + $0x20] sm:$0xff] %v142
  %151 = vst [vmem:[#allocation2 + $0x28] sm:$0xff] %v143
  %152 = vst [vmem:[#allocation2 + $0x30] sm:$0xff] %v144
  %153 = vst [vmem:[#allocation2 + $0x38] sm:$0xff] %v145
  // Predicated region
  $region14: #{general_layer_linear.1} parent=0 // pred_check
    %p154 = pneg %p12
  $region15: #{general_layer_linear.1} parent=0 // pred_check_branch
    %156 = sbr.rel (%p154) target = $region17
  $region16: #{general_layer_linear.1} parent=0 // pred_region
    %v157 = vld [vmem:[#allocation2] sm:$0xff]
    %v158 = vld [vmem:[#allocation2 + $0x8] sm:$0xff]
    %v159 = vld [vmem:[#allocation2 + $0x10] sm:$0xff]
    %v160 = vld [vmem:[#allocation2 + $0x18] sm:$0xff]
    %v161 = vld [vmem:[#allocation2 + $0x20] sm:$0xff]
    %v162 = vld [vmem:[#allocation2 + $0x28] sm:$0xff]
    %v163 = vld [vmem:[#allocation2 + $0x30] sm:$0xff]
    %v164 = vld [vmem:[#allocation2 + $0x38] sm:$0xff]
    %v165 = vmax.f32 %v157, 0.0
    %v166 = vmax.f32 %v158, 0.0
    %v167 = vmax.f32 %v159, 0.0
    %v168 = vmax.f32 %v160, 0.0
    %v169 = vmax.f32 %v161, 0.0
    %v170 = vmax.f32 %v162, 0.0
    %v171 = vmax.f32 %v163, 0.0
    %v172 = vmax.f32 %v164, 0.0
    %173 = vst [vmem:[%s2] sm:$0xff] %v165
    %174 = vst [vmem:[%s2 + $0x8] sm:$0xff] %v166
    %175 = vst [vmem:[%s2 + $0x10] sm:$0xff] %v167
    %176 = vst [vmem:[%s2 + $0x18] sm:$0xff] %v168
    %177 = vst [vmem:[%s2 + $0x20] sm:$0xff] %v169
    %178 = vst [vmem:[%s2 + $0x28] sm:$0xff] %v170
    %179 = vst [vmem:[%s2 + $0x30] sm:$0xff] %v171
    %180 = vst [vmem:[%s2 + $0x38] sm:$0xff] %v172
  $region17: #{general_layer_linear.1} parent=0 // pred_fallthru
    _
  // Predicated region
  $region18: #{general_layer_linear.1} parent=0 // pred_check
    _
  $region19: #{general_layer_linear.1} parent=0 // pred_check_branch
    %182 = sbr.rel (0) target = $region21
  $region20: #{general_layer_linear.1} parent=0 // pred_region
    _
  $region21: #{general_layer_linear.1} parent=0 // pred_fallthru
    _
  // Predicated region
  $region22: #{general_layer_linear.1} parent=0 // pred_check
    _
  $region23: #{general_layer_linear.1} parent=0 // pred_check_branch
    %184 = sbr.rel (0) target = $region25
  $region24: #{general_layer_linear.1} parent=0 // pred_region
    _
  $region25: #{general_layer_linear.1} parent=0 // pred_fallthru
    _

</llo_original>
